<compile_context>
chip_gen: v7x
topology: tpu7x:2x2x1
jax: 0.10.0
libtpu: 0.0.40
codegen_flags: <defaults>
</compile_context>

<pallas_src>
import jax
import jax.numpy as jnp
from jax.experimental import pallas as pl
from jax.experimental.pallas import tpu as pltpu


def _round_up(v, m):
    return ((v + m - 1) // m) * m


# ---------------------------------------------------------------------------
# Pallas kernel:  acc += A'[i,k] @ x[k]   ;   at last k:  MLP(acc) -> out[i]
# ---------------------------------------------------------------------------
def gin_conv_kernel(a_ref, x_ref, w1_ref, b1_ref, w2_ref, b2_ref, o_ref, acc_ref):
    k = pl.program_id(1)

    @pl.when(k == 0)
    def _():
        acc_ref[...] = jnp.zeros_like(acc_ref)

    # neighbor aggregation + (1+eps)*x_i (folded into A's diagonal):
    # bf16 MXU matmul with f32 accumulation.
    acc_ref[...] += jnp.dot(a_ref[...], x_ref[...],
                            preferred_element_type=jnp.float32)

    @pl.when(k == pl.num_programs(1) - 1)
    def _():
        sums = acc_ref[...]                                       # [tm, Fp] f32
        h = jnp.dot(sums, w1_ref[...],
                    preferred_element_type=jnp.float32) + b1_ref[...]
        h = jnp.maximum(h, 0.0)
        out = jnp.dot(h, w2_ref[...],
                      preferred_element_type=jnp.float32) + b2_ref[...]
        o_ref[...] = out.astype(o_ref.dtype)


# ---------------------------------------------------------------------------
# Wrapper: index glue (remove_self_loops + dense scatter), padding, pallas_call
# ---------------------------------------------------------------------------
def gin_conv(x, edge_index, w1, b1, w2, b2, eps=0.0):
    """GINConv forward.

    x:          [N, F_in] float node features (or [N], unsqueezed like PyG)
    edge_index: [2, E]    int32; message flows col -> row
    """
    if x.ndim == 1:                                   # x_in.unsqueeze(-1)
        x = x[:, None]
    x = x.astype(jnp.float32)
    n_nodes, f_in = x.shape
    hidden = w1.shape[1]
    f_out = w2.shape[1]

    LANE = 128
    fp_in = _round_up(f_in, LANE)
    hp = _round_up(hidden, LANE)
    fp_out = _round_up(f_out, LANE)

    # node-tile size: one tile for small graphs, 512 (multiple of 256 for the
    # v6e/v7x 256x256 MXU, small enough for v7x's 64 MiB VMEM) for large ones.
    if n_nodes <= 1024:
        tile = _round_up(max(n_nodes, 8), 128)
    else:
        tile = 512
    n_pad = _round_up(n_nodes, tile)

    # dense adjacency A'[i, j] = #edges (j -> i), self-loops removed,
    # (1 + eps) folded into the diagonal.  Built in f32 (exact counts), cast
    # to bf16 at the kernel boundary.
    row, col = edge_index[0], edge_index[1]
    valid = (row != col).astype(jnp.float32)
    adj = jnp.zeros((n_pad, n_pad), jnp.float32).at[row, col].add(valid)
    diag = jnp.arange(n_nodes)
    adj = adj.at[diag, diag].add(1.0 + float(eps))
    adj = adj.astype(jnp.bfloat16)

    # lane-pad operands (zero padding is exact: padded rows/cols contribute 0).
    x_p = jnp.zeros((n_pad, fp_in), jnp.bfloat16).at[:n_nodes, :f_in].set(
        x.astype(jnp.bfloat16))
    w1_p = jnp.zeros((fp_in, hp), jnp.float32).at[:f_in, :hidden].set(w1)
    b1_p = jnp.zeros((1, hp), jnp.float32).at[0, :hidden].set(b1)
    w2_p = jnp.zeros((hp, fp_out), jnp.float32).at[:hidden, :f_out].set(w2)
    b2_p = jnp.zeros((1, fp_out), jnp.float32).at[0, :f_out].set(b2)

    grid = (n_pad // tile, n_pad // tile)

    # scoped-VMEM budget: double-buffered inputs/outputs + f32 accumulator,
    # clamped inside every chip's physical VMEM (v7x has only 64 MiB).
    vmem_bytes = (2 * tile * tile * 2            # A' blocks, bf16, 2 buffers
                  + 2 * tile * fp_in * 2         # x blocks,  bf16, 2 buffers
                  + (fp_in * hp + hp * fp_out + hp + fp_out) * 4   # weights
                  + 2 * tile * fp_out * 4        # output blocks, 2 buffers
                  + tile * fp_in * 4)            # f32 accumulator scratch
    vmem_limit = int(min(max(4 * vmem_bytes, 16 << 20), 48 << 20))

    cost = pl.CostEstimate(
        flops=(2 * n_pad * n_pad * fp_in
               + 2 * n_pad * fp_in * hp
               + 2 * n_pad * hp * fp_out),
        transcendentals=0,
        bytes_accessed=(n_pad * n_pad * 2 + n_pad * fp_in * 2
                        + (fp_in * hp + hp * fp_out) * 4
                        + n_pad * fp_out * 4),
    )

    out = pl.pallas_call(
        gin_conv_kernel,
        out_shape=jax.ShapeDtypeStruct((n_pad, fp_out), jnp.float32),
        grid=grid,
        in_specs=[
            pl.BlockSpec((tile, tile), lambda i, k: (i, k)),    # A'
            pl.BlockSpec((tile, fp_in), lambda i, k: (k, 0)),   # x
            pl.BlockSpec((fp_in, hp), lambda i, k: (0, 0)),     # w1
            pl.BlockSpec((1, hp), lambda i, k: (0, 0)),         # b1
            pl.BlockSpec((hp, fp_out), lambda i, k: (0, 0)),    # w2
            pl.BlockSpec((1, fp_out), lambda i, k: (0, 0)),     # b2
        ],
        out_specs=pl.BlockSpec((tile, fp_out), lambda i, k: (i, 0)),
        scratch_shapes=[pltpu.VMEM((tile, fp_in), jnp.float32)],
        compiler_params=pltpu.CompilerParams(
            dimension_semantics=("parallel", "arbitrary"),
            vmem_limit_bytes=vmem_limit),
        cost_estimate=cost,
    )(adj, x_p, w1_p, b1_p, w2_p, b2_p)

    return out[:n_nodes, :f_out]


# ---------------------------------------------------------------------------
# Pure-JAX references (for correctness checks)
# ---------------------------------------------------------------------------
def gin_conv_ref(x, edge_index, w1, b1, w2, b2, eps=0.0):
    """Module-faithful f32 reference (edge-list scatter_add)."""
    row, col = edge_index[0], edge_index[1]
    valid = (row != col)[:, None].astype(x.dtype)
    msgs = x[col] * valid
    agg = jnp.zeros_like(x).at[row].add(msgs)
    sums = (1.0 + eps) * x + agg
    h = jnp.maximum(sums @ w1 + b1, 0.0)
    return h @ w2 + b2


def gin_conv_ref_kernel_prec(x, edge_index, w1, b1, w2, b2, eps=0.0):
    """Reference replicating the kernel's precision (bf16 A'/x, f32 acc/MLP)."""
    n = x.shape[0]
    row, col = edge_index[0], edge_index[1]
    valid = (row != col).astype(jnp.float32)
    adj = jnp.zeros((n, n), jnp.float32).at[row, col].add(valid)
    diag = jnp.arange(n)
    adj = adj.at[diag, diag].add(1.0 + float(eps))
    sums = jnp.dot(adj.astype(jnp.bfloat16), x.astype(jnp.bfloat16),
                   preferred_element_type=jnp.float32)
    h = jnp.maximum(sums @ w1 + b1, 0.0)
    return h @ w2 + b2


if __name__ == "__main__":
    key = jax.random.PRNGKey(0)
    k_x, k_e, k_w1, k_b1, k_w2, k_b2 = jax.random.split(key, 6)

    # small graph: 32 nodes, 16 input features, 64 edges
    N, F_IN, HIDDEN, F_OUT, E = 32, 16, 32, 16, 64

    x = jax.random.normal(k_x, (N, F_IN), dtype=jnp.float32)
    edge_index = jax.random.randint(k_e, (2, E), 0, N, dtype=jnp.int32)

    # MLP parameters: Linear(F_IN, HIDDEN) -> ReLU -> Linear(HIDDEN, F_OUT)
    w1 = jax.random.normal(k_w1, (F_IN, HIDDEN), dtype=jnp.float32) * (1.0 / F_IN) ** 0.5
    b1 = jax.random.normal(k_b1, (HIDDEN,), dtype=jnp.float32) * 0.01
    w2 = jax.random.normal(k_w2, (HIDDEN, F_OUT), dtype=jnp.float32) * (1.0 / HIDDEN) ** 0.5
    b2 = jax.random.normal(k_b2, (F_OUT,), dtype=jnp.float32) * 0.01

    eps = 0.0  # GINConv default (train_eps=False -> buffer filled with initial_eps)

    out = gin_conv(x, edge_index, w1, b1, w2, b2, eps=eps)
    out = jax.block_until_ready(out)
    assert out.shape == (N, F_OUT)

    # tight check vs a precision-matched reference (same bf16 aggregation)
    ref_prec = gin_conv_ref_kernel_prec(x, edge_index, w1, b1, w2, b2, eps=eps)
    assert jnp.allclose(out, ref_prec, atol=1e-3, rtol=1e-3), \
        "mismatch vs precision-matched reference"

    # module-semantics check vs pure-f32 reference (loose: bf16 aggregation)
    ref = gin_conv_ref(x, edge_index, w1, b1, w2, b2, eps=eps)
    assert jnp.allclose(out, ref, atol=5e-2, rtol=5e-2), \
        "mismatch vs f32 reference"

    print("KERNEL_OK")
</pallas_src>

<mosaic_0001>
module attributes {stable_mosaic.version = 11 : i64} {
  func.func @gin_conv_kernel(%arg0: i32, %arg1: i32, %arg2: memref<128x128xbf16, #tpu.memory_space<vmem>>, %arg3: memref<128x128xbf16, #tpu.memory_space<vmem>>, %arg4: memref<128x128xf32, #tpu.memory_space<vmem>>, %arg5: memref<1x128xf32, #tpu.memory_space<vmem>>, %arg6: memref<128x128xf32, #tpu.memory_space<vmem>>, %arg7: memref<1x128xf32, #tpu.memory_space<vmem>>, %arg8: memref<128x128xf32, #tpu.memory_space<vmem>>, %arg9: memref<128x128xf32, #tpu.memory_space<vmem>>) attributes {dimension_semantics = [#tpu.dimension_semantics<parallel>, #tpu.dimension_semantics<arbitrary>], iteration_bounds = array<i64: 1, 1>, scalar_prefetch = 0 : i64, scratch_operands = 1 : i64, tpu.core_type = #tpu.core_type<tc>, window_params = [{transform_indices = @transform_0, window_bounds = array<i64: 128, 128>}, {transform_indices = @transform_1, window_bounds = array<i64: 128, 128>}, {pipeline_mode = #tpu.pipeline_mode<synchronous>, transform_indices = @transform_2, window_bounds = array<i64: 128, 128>}, {pipeline_mode = #tpu.pipeline_mode<synchronous>, transform_indices = @transform_3, window_bounds = array<i64: 1, 128>}, {pipeline_mode = #tpu.pipeline_mode<synchronous>, transform_indices = @transform_4, window_bounds = array<i64: 128, 128>}, {pipeline_mode = #tpu.pipeline_mode<synchronous>, transform_indices = @transform_5, window_bounds = array<i64: 1, 128>}, {transform_indices = @transform_6, window_bounds = array<i64: 128, 128>}]} {
    %c0_i32 = arith.constant 0 : i32
    %0 = arith.cmpi eq, %arg1, %c0_i32 : i32
    %1 = arith.extui %0 : i1 to i32
    %c0_i32_0 = arith.constant 0 : i32
    %2 = arith.cmpi ne, %1, %c0_i32_0 : i32
    scf.if %2 {
      %cst_10 = arith.constant 0.000000e+00 : f32
      %12 = vector.broadcast %cst_10 : f32 to vector<128x128xf32>
      %c0_11 = arith.constant 0 : index
      %c0_12 = arith.constant 0 : index
      %13 = vector.load %arg9[%c0_11, %c0_12] : memref<128x128xf32, #tpu.memory_space<vmem>>, vector<128x128xf32>
      tpu.vector_store %arg9[%c0_11, %c0_12], %12 {strides = array<i32>} : memref<128x128xf32, #tpu.memory_space<vmem>>, vector<128x128xf32>,
    } else {
    }
    %c0 = arith.constant 0 : index
    %c0_1 = arith.constant 0 : index
    %3 = vector.load %arg9[%c0, %c0_1] : memref<128x128xf32, #tpu.memory_space<vmem>>, vector<128x128xf32>
    %c0_2 = arith.constant 0 : index
    %c0_3 = arith.constant 0 : index
    %4 = vector.load %arg2[%c0_2, %c0_3] : memref<128x128xbf16, #tpu.memory_space<vmem>>, vector<128x128xbf16>
    %c0_4 = arith.constant 0 : index
    %c0_5 = arith.constant 0 : index
    %5 = vector.load %arg3[%c0_4, %c0_5] : memref<128x128xbf16, #tpu.memory_space<vmem>>, vector<128x128xbf16>
    %cst = arith.constant dense<0.000000e+00> : vector<128x128xf32>
    %6 = tpu.matmul %4, %5, %cst {dimension_numbers = #tpu.dot_dimension_numbers<[1], [0], [0], [1], [0, 0, 1, 1], [], []>} : vector<128x128xbf16>, vector<128x128xbf16>, vector<128x128xf32> -> vector<128x128xf32>
    %7 = arith.addf %3, %6 : vector<128x128xf32>
    %c0_6 = arith.constant 0 : index
    %c0_7 = arith.constant 0 : index
    %8 = vector.load %arg9[%c0_6, %c0_7] : memref<128x128xf32, #tpu.memory_space<vmem>>, vector<128x128xf32>
    tpu.vector_store %arg9[%c0_6, %c0_7], %7 {strides = array<i32>} : memref<128x128xf32, #tpu.memory_space<vmem>>, vector<128x128xf32>,
    %c0_i32_8 = arith.constant 0 : i32
    %9 = arith.cmpi eq, %arg1, %c0_i32_8 : i32
    %10 = arith.extui %9 : i1 to i32
    %c0_i32_9 = arith.constant 0 : i32
    %11 = arith.cmpi ne, %10, %c0_i32_9 : i32
    scf.if %11 {
      %c0_10 = arith.constant 0 : index
      %c0_11 = arith.constant 0 : index
      %12 = vector.load %arg9[%c0_10, %c0_11] : memref<128x128xf32, #tpu.memory_space<vmem>>, vector<128x128xf32>
      %c0_12 = arith.constant 0 : index
      %c0_13 = arith.constant 0 : index
      %13 = vector.load %arg4[%c0_12, %c0_13] : memref<128x128xf32, #tpu.memory_space<vmem>>, vector<128x128xf32>
      %cst_14 = arith.constant dense<0.000000e+00> : vector<128x128xf32>
      %14 = tpu.matmul %12, %13, %cst_14 {dimension_numbers = #tpu.dot_dimension_numbers<[1], [0], [0], [1], [0, 0, 1, 1], [], []>} : vector<128x128xf32>, vector<128x128xf32>, vector<128x128xf32> -> vector<128x128xf32>
      %c0_15 = arith.constant 0 : index
      %c0_16 = arith.constant 0 : index
      %15 = vector.load %arg5[%c0_15, %c0_16] : memref<1x128xf32, #tpu.memory_space<vmem>>, vector<1x128xf32>
      %16 = vector.broadcast %15 : vector<1x128xf32> to vector<128x128xf32>
      %17 = arith.addf %14, %16 : vector<128x128xf32>
      %cst_17 = arith.constant 0.000000e+00 : f32
      %18 = vector.broadcast %cst_17 : f32 to vector<128x128xf32>
      %19 = arith.maximumf %17, %18 : vector<128x128xf32>
      %c0_18 = arith.constant 0 : index
      %c0_19 = arith.constant 0 : index
      %20 = vector.load %arg6[%c0_18, %c0_19] : memref<128x128xf32, #tpu.memory_space<vmem>>, vector<128x128xf32>
      %cst_20 = arith.constant dense<0.000000e+00> : vector<128x128xf32>
      %21 = tpu.matmul %19, %20, %cst_20 {dimension_numbers = #tpu.dot_dimension_numbers<[1], [0], [0], [1], [0, 0, 1, 1], [], []>} : vector<128x128xf32>, vector<128x128xf32>, vector<128x128xf32> -> vector<128x128xf32>
      %c0_21 = arith.constant 0 : index
      %c0_22 = arith.constant 0 : index
      %22 = vector.load %arg7[%c0_21, %c0_22] : memref<1x128xf32, #tpu.memory_space<vmem>>, vector<1x128xf32>
      %23 = vector.broadcast %22 : vector<1x128xf32> to vector<128x128xf32>
      %24 = arith.addf %21, %23 : vector<128x128xf32>
      %c0_23 = arith.constant 0 : index
      %c0_24 = arith.constant 0 : index
      %25 = vector.load %arg8[%c0_23, %c0_24] : memref<128x128xf32, #tpu.memory_space<vmem>>, vector<128x128xf32>
      tpu.vector_store %arg8[%c0_23, %c0_24], %24 {strides = array<i32>} : memref<128x128xf32, #tpu.memory_space<vmem>>, vector<128x128xf32>,
    } else {
    }
    return
  }
  func.func @transform_0(%arg0: i32, %arg1: i32) -> (i32, i32) {
    %c0_i32 = arith.constant 0 : i32
    return %arg0, %arg1 : i32, i32
  }
  func.func @transform_1(%arg0: i32, %arg1: i32) -> (i32, i32) {
    %c0_i32 = arith.constant 0 : i32
    %c0_i32_0 = arith.constant 0 : i32
    return %arg1, %c0_i32 : i32, i32
  }
  func.func @transform_2(%arg0: i32, %arg1: i32) -> (i32, i32) {
    %c0_i32 = arith.constant 0 : i32
    %c0_i32_0 = arith.constant 0 : i32
    %c0_i32_1 = arith.constant 0 : i32
    return %c0_i32, %c0_i32_0 : i32, i32
  }
  func.func @transform_3(%arg0: i32, %arg1: i32) -> (i32, i32) {
    %c0_i32 = arith.constant 0 : i32
    %c0_i32_0 = arith.constant 0 : i32
    %c0_i32_1 = arith.constant 0 : i32
    return %c0_i32, %c0_i32_0 : i32, i32
  }
  func.func @transform_4(%arg0: i32, %arg1: i32) -> (i32, i32) {
    %c0_i32 = arith.constant 0 : i32
    %c0_i32_0 = arith.constant 0 : i32
    %c0_i32_1 = arith.constant 0 : i32
    return %c0_i32, %c0_i32_0 : i32, i32
  }
  func.func @transform_5(%arg0: i32, %arg1: i32) -> (i32, i32) {
    %c0_i32 = arith.constant 0 : i32
    %c0_i32_0 = arith.constant 0 : i32
    %c0_i32_1 = arith.constant 0 : i32
    return %c0_i32, %c0_i32_0 : i32, i32
  }
  func.func @transform_6(%arg0: i32, %arg1: i32) -> (i32, i32) {
    %c0_i32 = arith.constant 0 : i32
    %c0_i32_0 = arith.constant 0 : i32
    return %arg0, %c0_i32 : i32, i32
  }
}

</mosaic_0001>

<llo_original>
// kernel: tpu_custom_call.1
$region0: #{tpu_custom_call.1}
  #allocation0 [shape = 'u32[]', space=smem, size = 0x4, offset = 0x4, fixed_abs, tag = 'smem constant byte address 0x4 - core index']
  #allocation1 [shape = 'u32[144,128]{1,0:T(1,128)}', space=vmem, size = 0x12000, scoped, tag = 'internal scratch']
  #allocation2 [shape = 'f32[128,128]{1,0:T(8,128)}', space=vmem, size = 0x10000, scoped, tag = 'scratch operand']
  %s0 = inlined_call_operand.hbm [shape: bf16[128,128], index: 0, kind: input, shape index: {}]
  %s1 = inlined_call_operand.hbm [shape: bf16[128,128], index: 1, kind: input, shape index: {}]
  %s2 = inlined_call_operand.hbm [shape: f32[128,128], index: 2, kind: input, shape index: {}]
  %s3 = inlined_call_operand.vmem [shape: f32[1,128], index: 3, kind: input, shape index: {}]
  %s4 = inlined_call_operand.hbm [shape: f32[128,128], index: 4, kind: input, shape index: {}]
  %s5 = inlined_call_operand.vmem [shape: f32[1,128], index: 5, kind: input, shape index: {}]
  %s6 = inlined_call_operand.hbm [shape: f32[128,128], index: 6, kind: output, shape index: {}]
  %s7 = sld [smem:[#allocation0]]
  $region58: #{tpu_custom_call.1} parent=0
    _
  %s9 = ssub.s32 1, %s7
  %s10 = scalar_select 0, %s9, %s7
  $region1: #{tpu_custom_call.1} parent=0
    #allocation3 [shape = 'u8[32768]{0}', space=vmem, size = 0x8000, scoped, tag = 'input window, operand 0, single buffered']
    #allocation4 [shape = 's32[1]{0}', space=sflag, size = 0x4, scoped, tag = 'scoped memory for tpu_custom_call.1']
    #allocation5 [shape = 's32[1]{0}', space=sflag, size = 0x4, scoped, tag = 'scoped memory for tpu_custom_call.1']
    #allocation6 [shape = 'u8[32768]{0}', space=vmem, size = 0x8000, scoped, tag = 'input window, operand 1, single buffered']
    #allocation7 [shape = 's32[1]{0}', space=sflag, size = 0x4, scoped, tag = 'scoped memory for tpu_custom_call.1']
    #allocation8 [shape = 'u8[65536]{0}', space=vmem, size = 0x10000, scoped, tag = 'input window, operand 2, single buffered']
    #allocation9 [shape = 'u8[65536]{0}', space=vmem, size = 0x10000, scoped, tag = 'input window, operand 4, single buffered']
    #allocation10 [shape = 's32[1]{0}', space=sflag, size = 0x4, scoped, tag = 'scoped memory for tpu_custom_call.1']
    #allocation11 [shape = 'u8[65536]{0}', space=vmem, size = 0x10000, scoped, tag = 'output window, operand 0, single buffered']
    %11 = vsyncpa [#allocation4], 0
    %12 = vsyncpa [#allocation7], 0
    %13 = vsyncpa [#allocation10], 0
    %14 = vsyncpa [#allocation5], 0
    // Predicated region
    $region2: #{tpu_custom_call.1} parent=1 // pred_check
      _
    $region3: #{tpu_custom_call.1} parent=1 // pred_check_branch
      %16 = sbr.rel (0) target = $region5
    $region4: #{tpu_custom_call.1} parent=1 // pred_region
      %s18 = ssub.s32 1024, 1024
      %19 = vsyncadd [#allocation4], %s18
      %s20 = sshll.u32 [#allocation3], 4
      %s21 = int_to_ptr.vmem [resolvable:$true] %s20
      %26 = dma.hbm_to_vmem [thread:$0]  %s0, 1024, %s21, [#allocation4], 64, 64, 4
    $region5: #{tpu_custom_call.1} parent=1 // pred_fallthru
      _
    // Predicated region
    $region6: #{tpu_custom_call.1} parent=1 // pred_check
      _
    $region7: #{tpu_custom_call.1} parent=1 // pred_check_branch
      %28 = sbr.rel (0) target = $region9
    $region8: #{tpu_custom_call.1} parent=1 // pred_region
      %s30 = ssub.s32 1024, 1024
      %31 = vsyncadd [#allocation7], %s30
      %s32 = sshll.u32 [#allocation6], 4
      %s33 = int_to_ptr.vmem [resolvable:$true] %s32
      %38 = dma.hbm_to_vmem [thread:$0]  %s1, 1024, %s33, [#allocation7], 64, 64, 4
    $region9: #{tpu_custom_call.1} parent=1 // pred_fallthru
      _
    // Predicated region
    $region10: #{tpu_custom_call.1} parent=1 // pred_check
      _
    $region11: #{tpu_custom_call.1} parent=1 // pred_check_branch
      %40 = sbr.rel (0) target = $region13
    $region12: #{tpu_custom_call.1} parent=1 // pred_region
      %s42 = ssub.s32 2048, 2048
      %43 = vsyncadd [#allocation7], %s42
      %s44 = sshll.u32 [#allocation8], 4
      %s45 = int_to_ptr.vmem [resolvable:$true] %s44
      %50 = dma.hbm_to_vmem [thread:$0]  %s2, 2048, %s45, [#allocation7], 128, 128, 8
    $region13: #{tpu_custom_call.1} parent=1 // pred_fallthru
      _
    // Predicated region
    $region14: #{tpu_custom_call.1} parent=1 // pred_check
      _
    $region15: #{tpu_custom_call.1} parent=1 // pred_check_branch
      %52 = sbr.rel (0) target = $region17
    $region16: #{tpu_custom_call.1} parent=1 // pred_region
      _
    $region17: #{tpu_custom_call.1} parent=1 // pred_fallthru
      _
    // Predicated region
    $region18: #{tpu_custom_call.1} parent=1 // pred_check
      _
    $region19: #{tpu_custom_call.1} parent=1 // pred_check_branch
      %54 = sbr.rel (0) target = $region21
    $region20: #{tpu_custom_call.1} parent=1 // pred_region
      %s56 = ssub.s32 2048, 2048
      %57 = vsyncadd [#allocation10], %s56
      %s58 = sshll.u32 [#allocation9], 4
      %s59 = int_to_ptr.vmem [resolvable:$true] %s58
      %64 = dma.hbm_to_vmem [thread:$0]  %s4, 2048, %s59, [#allocation10], 128, 128, 8
    $region21: #{tpu_custom_call.1} parent=1 // pred_fallthru
      _
    // Predicated region
    $region22: #{tpu_custom_call.1} parent=1 // pred_check
      _
    $region23: #{tpu_custom_call.1} parent=1 // pred_check_branch
      %66 = sbr.rel (0) target = $region25
    $region24: #{tpu_custom_call.1} parent=1 // pred_region
      _
    $region25: #{tpu_custom_call.1} parent=1 // pred_fallthru
      _
    // Predicated region
    $region26: #{tpu_custom_call.1} parent=1 // pred_check
      _
    $region27: #{tpu_custom_call.1} parent=1 // pred_check_branch
      %68 = sbr.rel (0) target = $region29
    $region28: #{tpu_custom_call.1} parent=1 // pred_region
      %69 = dma.done [#allocation4], 1024
    $region29: #{tpu_custom_call.1} parent=1 // pred_fallthru
      _
    // Predicated region
    $region30: #{tpu_custom_call.1} parent=1 // pred_check
      _
    $region31: #{tpu_custom_call.1} parent=1 // pred_check_branch
      %71 = sbr.rel (0) target = $region33
    $region32: #{tpu_custom_call.1} parent=1 // pred_region
      %72 = dma.done [#allocation7], 1024
    $region33: #{tpu_custom_call.1} parent=1 // pred_fallthru
      _
    // Predicated region
    $region34: #{tpu_custom_call.1} parent=1 // pred_check
      _
    $region35: #{tpu_custom_call.1} parent=1 // pred_check_branch
      %74 = sbr.rel (0) target = $region37
    $region36: #{tpu_custom_call.1} parent=1 // pred_region
      %75 = dma.done [#allocation7], 2048
    $region37: #{tpu_custom_call.1} parent=1 // pred_fallthru
      _
    // Predicated region
    $region38: #{tpu_custom_call.1} parent=1 // pred_check
      _
    $region39: #{tpu_custom_call.1} parent=1 // pred_check_branch
      %77 = sbr.rel (0) target = $region41
    $region40: #{tpu_custom_call.1} parent=1 // pred_region
      %78 = dma.done [#allocation10], 2048
    $region41: #{tpu_custom_call.1} parent=1 // pred_fallthru
      _
    %p80 = scmp.eq.s32.totalorder 0, 0
    // Predicated region
    $region42: #{tpu_custom_call.1} parent=1 // pred_check
      %p81 = pneg %p80
    $region43: #{tpu_custom_call.1} parent=1 // pred_check_branch
      %83 = sbr.rel (%p81) target = $region45
    $region44: #{tpu_custom_call.1} parent=1 // pred_region
      %84 = vst [vmem:[#allocation2] sm:$0xff] 0.0
      %85 = vst [vmem:[#allocation2 + $0x8] sm:$0xff] 0.0
      %86 = vst [vmem:[#allocation2 + $0x10] sm:$0xff] 0.0
      %87 = vst [vmem:[#allocation2 + $0x18] sm:$0xff] 0.0
      %88 = vst [vmem:[#allocation2 + $0x20] sm:$0xff] 0.0
      %89 = vst [vmem:[#allocation2 + $0x28] sm:$0xff] 0.0
      %90 = vst [vmem:[#allocation2 + $0x30] sm:$0xff] 0.0
      %91 = vst [vmem:[#allocation2 + $0x38] sm:$0xff] 0.0
      %92 = vst [vmem:[#allocation2 + $0x40] sm:$0xff] 0.0
      %93 = vst [vmem:[#allocation2 + $0x48] sm:$0xff] 0.0
      %94 = vst [vmem:[#allocation2 + $0x50] sm:$0xff] 0.0
      %95 = vst [vmem:[#allocation2 + $0x58] sm:$0xff] 0.0
      %96 = vst [vmem:[#allocation2 + $0x60] sm:$0xff] 0.0
      %97 = vst [vmem:[#allocation2 + $0x68] sm:$0xff] 0.0
      %98 = vst [vmem:[#allocation2 + $0x70] sm:$0xff] 0.0
      %99 = vst [vmem:[#allocation2 + $0x78] sm:$0xff] 0.0
    $region45: #{tpu_custom_call.1} parent=1 // pred_fallthru
      _
    %v100 = vld [vmem:[#allocation2] sm:$0xff]
    %v101 = vld [vmem:[#allocation2 + $0x8] sm:$0xff]
    %v102 = vld [vmem:[#allocation2 + $0x10] sm:$0xff]
    %v103 = vld [vmem:[#allocation2 + $0x18] sm:$0xff]
    %v104 = vld [vmem:[#allocation2 + $0x20] sm:$0xff]
    %v105 = vld [vmem:[#allocation2 + $0x28] sm:$0xff]
    %v106 = vld [vmem:[#allocation2 + $0x30] sm:$0xff]
    %v107 = vld [vmem:[#allocation2 + $0x38] sm:$0xff]
    %v108 = vld [vmem:[#allocation2 + $0x40] sm:$0xff]
    %v109 = vld [vmem:[#allocation2 + $0x48] sm:$0xff]
    %v110 = vld [vmem:[#allocation2 + $0x50] sm:$0xff]
    %v111 = vld [vmem:[#allocation2 + $0x58] sm:$0xff]
    %v112 = vld [vmem:[#allocation2 + $0x60] sm:$0xff]
    %v113 = vld [vmem:[#allocation2 + $0x68] sm:$0xff]
    %v114 = vld [vmem:[#allocation2 + $0x70] sm:$0xff]
    %v115 = vld [vmem:[#allocation2 + $0x78] sm:$0xff]
    %v116 = vld [vmem:[#allocation3] sm:$0xf]
    %v117 = vld [vmem:[#allocation3 + $0x4] sm:$0xf]
    %v118 = vld [vmem:[#allocation3 + $0x8] sm:$0xf]
    %v119 = vld [vmem:[#allocation3 + $0xc] sm:$0xf]
    %v120 = vld [vmem:[#allocation3 + $0x10] sm:$0xf]
    %v121 = vld [vmem:[#allocation3 + $0x14] sm:$0xf]
    %v122 = vld [vmem:[#allocation3 + $0x18] sm:$0xf]
    %v123 = vld [vmem:[#allocation3 + $0x1c] sm:$0xf]
    %v124 = vld [vmem:[#allocation3 + $0x20] sm:$0xf]
    %v125 = vld [vmem:[#allocation3 + $0x24] sm:$0xf]
    %v126 = vld [vmem:[#allocation3 + $0x28] sm:$0xf]
    %v127 = vld [vmem:[#allocation3 + $0x2c] sm:$0xf]
    %v128 = vld [vmem:[#allocation3 + $0x30] sm:$0xf]
    %v129 = vld [vmem:[#allocation3 + $0x34] sm:$0xf]
    %v130 = vld [vmem:[#allocation3 + $0x38] sm:$0xf]
    %v131 = vld [vmem:[#allocation3 + $0x3c] sm:$0xf]
    %v132 = vld [vmem:[#allocation6] sm:$0xf]
    %v133 = vld [vmem:[#allocation6 + $0x4] sm:$0xf]
    %v134 = vld [vmem:[#allocation6 + $0x8] sm:$0xf]
    %v135 = vld [vmem:[#allocation6 + $0xc] sm:$0xf]
    %v136 = vld [vmem:[#allocation6 + $0x10] sm:$0xf]
    %v137 = vld [vmem:[#allocation6 + $0x14] sm:$0xf]
    %v138 = vld [vmem:[#allocation6 + $0x18] sm:$0xf]
    %v139 = vld [vmem:[#allocation6 + $0x1c] sm:$0xf]
    %v140 = vld [vmem:[#allocation6 + $0x20] sm:$0xf]
    %v141 = vld [vmem:[#allocation6 + $0x24] sm:$0xf]
    %v142 = vld [vmem:[#allocation6 + $0x28] sm:$0xf]
    %v143 = vld [vmem:[#allocation6 + $0x2c] sm:$0xf]
    %v144 = vld [vmem:[#allocation6 + $0x30] sm:$0xf]
    %v145 = vld [vmem:[#allocation6 + $0x34] sm:$0xf]
    %v146 = vld [vmem:[#allocation6 + $0x38] sm:$0xf]
    %v147 = vld [vmem:[#allocation6 + $0x3c] sm:$0xf]
    %v164 = vunpack.c.l.b16 %v116
    %v165 = vunpack.c.l.b16 %v117
    %v166 = vunpack.c.l.b16 %v118
    %v167 = vunpack.c.l.b16 %v119
    %v168 = vunpack.c.l.b16 %v120
    %v169 = vunpack.c.l.b16 %v121
    %v170 = vunpack.c.l.b16 %v122
    %v171 = vunpack.c.l.b16 %v123
    %v172 = vunpack.c.l.b16 %v124
    %v173 = vunpack.c.l.b16 %v125
    %v174 = vunpack.c.l.b16 %v126
    %v175 = vunpack.c.l.b16 %v127
    %v176 = vunpack.c.l.b16 %v128
    %v177 = vunpack.c.l.b16 %v129
    %v178 = vunpack.c.l.b16 %v130
    %v179 = vunpack.c.l.b16 %v131
    %v180 = vpack.c.b16 %v165, %v164
    %v181 = vpack.c.b16 %v167, %v166
    %v182 = vpack.c.b16 %v169, %v168
    %v183 = vpack.c.b16 %v171, %v170
    %v184 = vpack.c.b16 %v173, %v172
    %v185 = vpack.c.b16 %v175, %v174
    %v186 = vpack.c.b16 %v177, %v176
    %v187 = vpack.c.b16 %v179, %v178
    %v212 = vunpack.c.l.b16 %v132
    %v213 = vunpack.c.l.b16 %v133
    %v214 = vunpack.c.l.b16 %v134
    %v215 = vunpack.c.l.b16 %v135
    %v216 = vunpack.c.l.b16 %v136
    %v217 = vunpack.c.l.b16 %v137
    %v218 = vunpack.c.l.b16 %v138
    %v219 = vunpack.c.l.b16 %v139
    %v220 = vunpack.c.l.b16 %v140
    %v221 = vunpack.c.l.b16 %v141
    %v222 = vunpack.c.l.b16 %v142
    %v223 = vunpack.c.l.b16 %v143
    %v224 = vunpack.c.l.b16 %v144
    %v225 = vunpack.c.l.b16 %v145
    %v226 = vunpack.c.l.b16 %v146
    %v227 = vunpack.c.l.b16 %v147
    %v228 = vpack.c.b16 %v213, %v212
    %v229 = vpack.c.b16 %v215, %v214
    %v230 = vpack.c.b16 %v217, %v216
    %v231 = vpack.c.b16 %v219, %v218
    %v232 = vpack.c.b16 %v221, %v220
    %v233 = vpack.c.b16 %v223, %v222
    %v234 = vpack.c.b16 %v225, %v224
    %v235 = vpack.c.b16 %v227, %v226
    %244 = vmatprep.subr.bf16.mxu0 0
    %245 = vmatpush1.bf16.msra.mxu0 %v228
    %246 = vmatprep.subr.bf16.mxu0 0
    %247 = vmatpush1.bf16.msra.mxu0 %v229
    %248 = vmatprep.subr.bf16.mxu0 0
    %249 = vmatpush1.bf16.msra.mxu0 %v230
    %250 = vmatprep.subr.bf16.mxu0 0
    %251 = vmatpush1.bf16.msra.mxu0 %v231
    %252 = vmatprep.subr.bf16.mxu0 0
    %253 = vmatpush1.bf16.msra.mxu0 %v232
    %254 = vmatprep.subr.bf16.mxu0 0
    %255 = vmatpush1.bf16.msra.mxu0 %v233
    %256 = vmatprep.subr.bf16.mxu0 0
    %257 = vmatpush1.bf16.msra.mxu0 %v234
    %258 = vmatprep.subr.bf16.mxu0 0
    %259 = vmatpush1.bf16.msra.mxu0 %v235
    %260 = vmatprep.subr.bf16.mxu0 0
    %261 = vmatpush1.bf16.msra.mxu0 0
    %262 = vmatprep.subr.bf16.mxu0 0
    %263 = vmatpush1.bf16.msra.mxu0 0
    %264 = vmatprep.subr.bf16.mxu0 0
    %265 = vmatpush1.bf16.msra.mxu0 0
    %266 = vmatprep.subr.bf16.mxu0 0
    %267 = vmatpush1.bf16.msra.mxu0 0
    %268 = vmatprep.subr.bf16.mxu0 0
    %269 = vmatpush1.bf16.msra.mxu0 0
    %270 = vmatprep.subr.bf16.mxu0 0
    %271 = vmatpush1.bf16.msra.mxu0 0
    %272 = vmatprep.subr.bf16.mxu0 0
    %273 = vmatpush1.bf16.msra.mxu0 0
    %274 = vmatprep.subr.bf16.mxu0 0
    %275 = vmatpush1.bf16.msra.mxu0 0
    %276 = vmatprep.mubr.bf16.mxu0 0
    %277 = vmatmul.mubr.bf16.gmra.mrb[0].mxu0 %v180
    %v278 = vpop.f32.mrb[0].mxu0
    %v279 = vadd.f32 0.0, %v278
    %v280 = vpop.f32.mrb[0].mxu0
    %v281 = vpop.f32.mrb[0].mxu0
    %v282 = vadd.f32 0.0, %v281
    %v283 = vpop.f32.mrb[0].mxu0
    %284 = vmatprep.mubr.bf16.mxu0 0
    %285 = vmatmul.mubr.bf16.gmra.mrb[0].mxu0 %v181
    %v286 = vpop.f32.mrb[0].mxu0
    %v287 = vadd.f32 0.0, %v286
    %v288 = vpop.f32.mrb[0].mxu0
    %v289 = vpop.f32.mrb[0].mxu0
    %v290 = vadd.f32 0.0, %v289
    %v291 = vpop.f32.mrb[0].mxu0
    %292 = vmatprep.mubr.bf16.mxu0 0
    %293 = vmatmul.mubr.bf16.gmra.mrb[0].mxu0 %v182
    %v294 = vpop.f32.mrb[0].mxu0
    %v295 = vadd.f32 0.0, %v294
    %v296 = vpop.f32.mrb[0].mxu0
    %v297 = vpop.f32.mrb[0].mxu0
    %v298 = vadd.f32 0.0, %v297
    %v299 = vpop.f32.mrb[0].mxu0
    %300 = vmatprep.mubr.bf16.mxu0 0
    %301 = vmatmul.mubr.bf16.gmra.mrb[0].mxu0 %v183
    %v302 = vpop.f32.mrb[0].mxu0
    %v303 = vadd.f32 0.0, %v302
    %v304 = vpop.f32.mrb[0].mxu0
    %v305 = vpop.f32.mrb[0].mxu0
    %v306 = vadd.f32 0.0, %v305
    %v307 = vpop.f32.mrb[0].mxu0
    %308 = vmatprep.mubr.bf16.mxu0 0
    %309 = vmatmul.mubr.bf16.gmra.mrb[0].mxu0 %v184
    %v310 = vpop.f32.mrb[0].mxu0
    %v311 = vadd.f32 0.0, %v310
    %v312 = vpop.f32.mrb[0].mxu0
    %v313 = vpop.f32.mrb[0].mxu0
    %v314 = vadd.f32 0.0, %v313
    %v315 = vpop.f32.mrb[0].mxu0
    %316 = vmatprep.mubr.bf16.mxu0 0
    %317 = vmatmul.mubr.bf16.gmra.mrb[0].mxu0 %v185
    %v318 = vpop.f32.mrb[0].mxu0
    %v319 = vadd.f32 0.0, %v318
    %v320 = vpop.f32.mrb[0].mxu0
    %v321 = vpop.f32.mrb[0].mxu0
    %v322 = vadd.f32 0.0, %v321
    %v323 = vpop.f32.mrb[0].mxu0
    %324 = vmatprep.mubr.bf16.mxu0 0
    %325 = vmatmul.mubr.bf16.gmra.mrb[0].mxu0 %v186
    %v326 = vpop.f32.mrb[0].mxu0
    %v327 = vadd.f32 0.0, %v326
    %v328 = vpop.f32.mrb[0].mxu0
    %v329 = vpop.f32.mrb[0].mxu0
    %v330 = vadd.f32 0.0, %v329
    %v331 = vpop.f32.mrb[0].mxu0
    %332 = vmatprep.mubr.bf16.mxu0 0
    %333 = vmatmul.mubr.bf16.gmra.mrb[0].mxu0 %v187
    %v334 = vpop.f32.mrb[0].mxu0
    %v335 = vadd.f32 0.0, %v334
    %v336 = vpop.f32.mrb[0].mxu0
    %v337 = vpop.f32.mrb[0].mxu0
    %v338 = vadd.f32 0.0, %v337
    %v339 = vpop.f32.mrb[0].mxu0
    %340 = vdwg.mxu0
    %v341 = vadd.f32 %v100, %v279
    %v342 = vadd.f32 %v101, %v282
    %v343 = vadd.f32 %v102, %v287
    %v344 = vadd.f32 %v103, %v290
    %v345 = vadd.f32 %v104, %v295
    %v346 = vadd.f32 %v105, %v298
    %v347 = vadd.f32 %v106, %v303
    %v348 = vadd.f32 %v107, %v306
    %v349 = vadd.f32 %v108, %v311
    %v350 = vadd.f32 %v109, %v314
    %v351 = vadd.f32 %v110, %v319
    %v352 = vadd.f32 %v111, %v322
    %v353 = vadd.f32 %v112, %v327
    %v354 = vadd.f32 %v113, %v330
    %v355 = vadd.f32 %v114, %v335
    %v356 = vadd.f32 %v115, %v338
    %357 = vst [vmem:[#allocation2] sm:$0xff] %v341
    %358 = vst [vmem:[#allocation2 + $0x8] sm:$0xff] %v342
    %359 = vst [vmem:[#allocation2 + $0x10] sm:$0xff] %v343
    %360 = vst [vmem:[#allocation2 + $0x18] sm:$0xff] %v344
    %361 = vst [vmem:[#allocation2 + $0x20] sm:$0xff] %v345
    %362 = vst [vmem:[#allocation2 + $0x28] sm:$0xff] %v346
    %363 = vst [vmem:[#allocation2 + $0x30] sm:$0xff] %v347
    %364 = vst [vmem:[#allocation2 + $0x38] sm:$0xff] %v348
    %365 = vst [vmem:[#allocation2 + $0x40] sm:$0xff] %v349
    %366 = vst [vmem:[#allocation2 + $0x48] sm:$0xff] %v350
    %367 = vst [vmem:[#allocation2 + $0x50] sm:$0xff] %v351
    %368 = vst [vmem:[#allocation2 + $0x58] sm:$0xff] %v352
    %369 = vst [vmem:[#allocation2 + $0x60] sm:$0xff] %v353
    %370 = vst [vmem:[#allocation2 + $0x68] sm:$0xff] %v354
    %371 = vst [vmem:[#allocation2 + $0x70] sm:$0xff] %v355
    %372 = vst [vmem:[#allocation2 + $0x78] sm:$0xff] %v356
    // Predicated region
    $region46: #{tpu_custom_call.1} parent=1 // pred_check
      %p373 = pneg %p80
    $region47: #{tpu_custom_call.1} parent=1 // pred_check_branch
      %375 = sbr.rel (%p373) target = $region49
    $region48: #{tpu_custom_call.1} parent=1 // pred_region
      %v376 = vld [vmem:[#allocation2] sm:$0xff]
      %v377 = vld [vmem:[#allocation2 + $0x8] sm:$0xff]
      %v378 = vld [vmem:[#allocation2 + $0x10] sm:$0xff]
      %v379 = vld [vmem:[#allocation2 + $0x18] sm:$0xff]
      %v380 = vld [vmem:[#allocation2 + $0x20] sm:$0xff]
      %v381 = vld [vmem:[#allocation2 + $0x28] sm:$0xff]
      %v382 = vld [vmem:[#allocation2 + $0x30] sm:$0xff]
      %v383 = vld [vmem:[#allocation2 + $0x38] sm:$0xff]
      %v384 = vld [vmem:[#allocation2 + $0x40] sm:$0xff]
      %v385 = vld [vmem:[#allocation2 + $0x48] sm:$0xff]
      %v386 = vld [vmem:[#allocation2 + $0x50] sm:$0xff]
      %v387 = vld [vmem:[#allocation2 + $0x58] sm:$0xff]
      %v388 = vld [vmem:[#allocation2 + $0x60] sm:$0xff]
      %v389 = vld [vmem:[#allocation2 + $0x68] sm:$0xff]
      %v390 = vld [vmem:[#allocation2 + $0x70] sm:$0xff]
      %v391 = vld [vmem:[#allocation2 + $0x78] sm:$0xff]
      %v392 = vld [vmem:[#allocation8] sm:$0xff]
      %v393 = vld [vmem:[#allocation8 + $0x8] sm:$0xff]
      %v394 = vld [vmem:[#allocation8 + $0x10] sm:$0xff]
      %v395 = vld [vmem:[#allocation8 + $0x18] sm:$0xff]
      %v396 = vld [vmem:[#allocation8 + $0x20] sm:$0xff]
      %v397 = vld [vmem:[#allocation8 + $0x28] sm:$0xff]
      %v398 = vld [vmem:[#allocation8 + $0x30] sm:$0xff]
      %v399 = vld [vmem:[#allocation8 + $0x38] sm:$0xff]
      %v400 = vld [vmem:[#allocation8 + $0x40] sm:$0xff]
      %v401 = vld [vmem:[#allocation8 + $0x48] sm:$0xff]
      %v402 = vld [vmem:[#allocation8 + $0x50] sm:$0xff]
      %v403 = vld [vmem:[#allocation8 + $0x58] sm:$0xff]
      %v404 = vld [vmem:[#allocation8 + $0x60] sm:$0xff]
      %v405 = vld [vmem:[#allocation8 + $0x68] sm:$0xff]
      %v406 = vld [vmem:[#allocation8 + $0x70] sm:$0xff]
      %v407 = vld [vmem:[#allocation8 + $0x78] sm:$0xff]
      %v408 = vld [vmem:[%s3] sm:$0x1]
      %v410 = vlaneseq
      %v411 = vshrl.u32 %v410, 7
      %v412 = vsub.s32 0, %v411
      %v413 = vrot.slane %v408, %v412
      %415 = vmatprep.subr.mxu0 0.0
      %416 = vmatpush1.msra.mxu0 %v392
      %417 = vmatprep.subr.mxu0 0.0
      %418 = vmatpush1.msra.mxu0 %v393
      %419 = vmatprep.subr.mxu0 0.0
      %420 = vmatpush1.msra.mxu0 %v394
      %421 = vmatprep.subr.mxu0 0.0
      %422 = vmatpush1.msra.mxu0 %v395
      %423 = vmatprep.subr.mxu0 0.0
      %424 = vmatpush1.msra.mxu0 %v396
      %425 = vmatprep.subr.mxu0 0.0
      %426 = vmatpush1.msra.mxu0 %v397
      %427 = vmatprep.subr.mxu0 0.0
      %428 = vmatpush1.msra.mxu0 %v398
      %429 = vmatprep.subr.mxu0 0.0
      %430 = vmatpush1.msra.mxu0 %v399
      %431 = vmatprep.subr.mxu0 0.0
      %432 = vmatpush1.msra.mxu0 %v400
      %433 = vmatprep.subr.mxu0 0.0
      %434 = vmatpush1.msra.mxu0 %v401
      %435 = vmatprep.subr.mxu0 0.0
      %436 = vmatpush1.msra.mxu0 %v402
      %437 = vmatprep.subr.mxu0 0.0
      %438 = vmatpush1.msra.mxu0 %v403
      %439 = vmatprep.subr.mxu0 0.0
      %440 = vmatpush1.msra.mxu0 %v404
      %441 = vmatprep.subr.mxu0 0.0
      %442 = vmatpush1.msra.mxu0 %v405
      %443 = vmatprep.subr.mxu0 0.0
      %444 = vmatpush1.msra.mxu0 %v406
      %445 = vmatprep.subr.mxu0 0.0
      %446 = vmatpush1.msra.mxu0 %v407
      %447 = vmatprep.subr.mxu0 0.0
      %448 = vmatpush1.msra.mxu0 0.0
      %449 = vmatprep.subr.mxu0 0.0
      %450 = vmatpush1.msra.mxu0 0.0
      %451 = vmatprep.subr.mxu0 0.0
      %452 = vmatpush1.msra.mxu0 0.0
      %453 = vmatprep.subr.mxu0 0.0
      %454 = vmatpush1.msra.mxu0 0.0
      %455 = vmatprep.subr.mxu0 0.0
      %456 = vmatpush1.msra.mxu0 0.0
      %457 = vmatprep.subr.mxu0 0.0
      %458 = vmatpush1.msra.mxu0 0.0
      %459 = vmatprep.subr.mxu0 0.0
      %460 = vmatpush1.msra.mxu0 0.0
      %461 = vmatprep.subr.mxu0 0.0
      %462 = vmatpush1.msra.mxu0 0.0
      %463 = vmatprep.subr.mxu0 0.0
      %464 = vmatpush1.msra.mxu0 0.0
      %465 = vmatprep.subr.mxu0 0.0
      %466 = vmatpush1.msra.mxu0 0.0
      %467 = vmatprep.subr.mxu0 0.0
      %468 = vmatpush1.msra.mxu0 0.0
      %469 = vmatprep.subr.mxu0 0.0
      %470 = vmatpush1.msra.mxu0 0.0
      %471 = vmatprep.subr.mxu0 0.0
      %472 = vmatpush1.msra.mxu0 0.0
      %473 = vmatprep.subr.mxu0 0.0
      %474 = vmatpush1.msra.mxu0 0.0
      %475 = vmatprep.subr.mxu0 0.0
      %476 = vmatpush1.msra.mxu0 0.0
      %477 = vmatprep.subr.mxu0 0.0
      %478 = vmatpush1.msra.mxu0 0.0
      %479 = vmatprep.mubr.f32.mxu0 0.0
      %480 = vmatmul.mubr.f32.gmra.mrb[0].mxu0 %v376
      %v481 = vpop.f32.mrb[0].mxu0
      %v482 = vadd.f32 %v413, %v481
      %v483 = vpop.f32.mrb[0].mxu0
      %484 = vmatprep.mubr.f32.mxu0 0.0
      %485 = vmatmul.mubr.f32.gmra.mrb[0].mxu0 %v377
      %v486 = vpop.f32.mrb[0].mxu0
      %v487 = vadd.f32 %v413, %v486
      %v488 = vpop.f32.mrb[0].mxu0
      %489 = vmatprep.mubr.f32.mxu0 0.0
      %490 = vmatmul.mubr.f32.gmra.mrb[0].mxu0 %v378
      %v491 = vpop.f32.mrb[0].mxu0
      %v492 = vadd.f32 %v413, %v491
      %v493 = vpop.f32.mrb[0].mxu0
      %494 = vmatprep.mubr.f32.mxu0 0.0
      %495 = vmatmul.mubr.f32.gmra.mrb[0].mxu0 %v379
      %v496 = vpop.f32.mrb[0].mxu0
      %v497 = vadd.f32 %v413, %v496
      %v498 = vpop.f32.mrb[0].mxu0
      %499 = vmatprep.mubr.f32.mxu0 0.0
      %500 = vmatmul.mubr.f32.gmra.mrb[0].mxu0 %v380
      %v501 = vpop.f32.mrb[0].mxu0
      %v502 = vadd.f32 %v413, %v501
      %v503 = vpop.f32.mrb[0].mxu0
      %504 = vmatprep.mubr.f32.mxu0 0.0
      %505 = vmatmul.mubr.f32.gmra.mrb[0].mxu0 %v381
      %v506 = vpop.f32.mrb[0].mxu0
      %v507 = vadd.f32 %v413, %v506
      %v508 = vpop.f32.mrb[0].mxu0
      %509 = vmatprep.mubr.f32.mxu0 0.0
      %510 = vmatmul.mubr.f32.gmra.mrb[0].mxu0 %v382
      %v511 = vpop.f32.mrb[0].mxu0
      %v512 = vadd.f32 %v413, %v511
      %v513 = vpop.f32.mrb[0].mxu0
      %514 = vmatprep.mubr.f32.mxu0 0.0
      %515 = vmatmul.mubr.f32.gmra.mrb[0].mxu0 %v383
      %v516 = vpop.f32.mrb[0].mxu0
      %v517 = vadd.f32 %v413, %v516
      %v518 = vpop.f32.mrb[0].mxu0
      %519 = vmatprep.mubr.f32.mxu0 0.0
      %520 = vmatmul.mubr.f32.gmra.mrb[0].mxu0 %v384
      %v521 = vpop.f32.mrb[0].mxu0
      %v522 = vadd.f32 %v413, %v521
      %v523 = vpop.f32.mrb[0].mxu0
      %524 = vmatprep.mubr.f32.mxu0 0.0
      %525 = vmatmul.mubr.f32.gmra.mrb[0].mxu0 %v385
      %v526 = vpop.f32.mrb[0].mxu0
      %v527 = vadd.f32 %v413, %v526
      %v528 = vpop.f32.mrb[0].mxu0
      %529 = vmatprep.mubr.f32.mxu0 0.0
      %530 = vmatmul.mubr.f32.gmra.mrb[0].mxu0 %v386
      %v531 = vpop.f32.mrb[0].mxu0
      %v532 = vadd.f32 %v413, %v531
      %v533 = vpop.f32.mrb[0].mxu0
      %534 = vmatprep.mubr.f32.mxu0 0.0
      %535 = vmatmul.mubr.f32.gmra.mrb[0].mxu0 %v387
      %v536 = vpop.f32.mrb[0].mxu0
      %v537 = vadd.f32 %v413, %v536
      %v538 = vpop.f32.mrb[0].mxu0
      %539 = vmatprep.mubr.f32.mxu0 0.0
      %540 = vmatmul.mubr.f32.gmra.mrb[0].mxu0 %v388
      %v541 = vpop.f32.mrb[0].mxu0
      %v542 = vadd.f32 %v413, %v541
      %v543 = vpop.f32.mrb[0].mxu0
      %544 = vmatprep.mubr.f32.mxu0 0.0
      %545 = vmatmul.mubr.f32.gmra.mrb[0].mxu0 %v389
      %v546 = vpop.f32.mrb[0].mxu0
      %v547 = vadd.f32 %v413, %v546
      %v548 = vpop.f32.mrb[0].mxu0
      %549 = vmatprep.mubr.f32.mxu0 0.0
      %550 = vmatmul.mubr.f32.gmra.mrb[0].mxu0 %v390
      %v551 = vpop.f32.mrb[0].mxu0
      %v552 = vadd.f32 %v413, %v551
      %v553 = vpop.f32.mrb[0].mxu0
      %554 = vmatprep.mubr.f32.mxu0 0.0
      %555 = vmatmul.mubr.f32.gmra.mrb[0].mxu0 %v391
      %v556 = vpop.f32.mrb[0].mxu0
      %v557 = vadd.f32 %v413, %v556
      %v558 = vpop.f32.mrb[0].mxu0
      %559 = vdwg.mxu0
      %v560 = vmax.f32 %v482, 0.0
      %v561 = vmax.f32 %v487, 0.0
      %v562 = vmax.f32 %v492, 0.0
      %v563 = vmax.f32 %v497, 0.0
      %v564 = vmax.f32 %v502, 0.0
      %v565 = vmax.f32 %v507, 0.0
      %v566 = vmax.f32 %v512, 0.0
      %v567 = vmax.f32 %v517, 0.0
      %v568 = vmax.f32 %v522, 0.0
      %v569 = vmax.f32 %v527, 0.0
      %v570 = vmax.f32 %v532, 0.0
      %v571 = vmax.f32 %v537, 0.0
      %v572 = vmax.f32 %v542, 0.0
      %v573 = vmax.f32 %v547, 0.0
      %v574 = vmax.f32 %v552, 0.0
      %v575 = vmax.f32 %v557, 0.0
      %v576 = vld [vmem:[#allocation9] sm:$0xff]
      %v577 = vld [vmem:[#allocation9 + $0x8] sm:$0xff]
      %v578 = vld [vmem:[#allocation9 + $0x10] sm:$0xff]
      %v579 = vld [vmem:[#allocation9 + $0x18] sm:$0xff]
      %v580 = vld [vmem:[#allocation9 + $0x20] sm:$0xff]
      %v581 = vld [vmem:[#allocation9 + $0x28] sm:$0xff]
      %v582 = vld [vmem:[#allocation9 + $0x30] sm:$0xff]
      %v583 = vld [vmem:[#allocation9 + $0x38] sm:$0xff]
      %v584 = vld [vmem:[#allocation9 + $0x40] sm:$0xff]
      %v585 = vld [vmem:[#allocation9 + $0x48] sm:$0xff]
      %v586 = vld [vmem:[#allocation9 + $0x50] sm:$0xff]
      %v587 = vld [vmem:[#allocation9 + $0x58] sm:$0xff]
      %v588 = vld [vmem:[#allocation9 + $0x60] sm:$0xff]
      %v589 = vld [vmem:[#allocation9 + $0x68] sm:$0xff]
      %v590 = vld [vmem:[#allocation9 + $0x70] sm:$0xff]
      %v591 = vld [vmem:[#allocation9 + $0x78] sm:$0xff]
      %v592 = vld [vmem:[%s5] sm:$0x1]
      %v594 = vlaneseq
      %v595 = vshrl.u32 %v594, 7
      %v596 = vsub.s32 0, %v595
      %v597 = vrot.slane %v592, %v596
      %599 = vmatprep.subr.mxu0 0.0
      %600 = vmatpush1.msra.mxu0 %v576
      %601 = vmatprep.subr.mxu0 0.0
      %602 = vmatpush1.msra.mxu0 %v577
      %603 = vmatprep.subr.mxu0 0.0
      %604 = vmatpush1.msra.mxu0 %v578
      %605 = vmatprep.subr.mxu0 0.0
      %606 = vmatpush1.msra.mxu0 %v579
      %607 = vmatprep.subr.mxu0 0.0
      %608 = vmatpush1.msra.mxu0 %v580
      %609 = vmatprep.subr.mxu0 0.0
      %610 = vmatpush1.msra.mxu0 %v581
      %611 = vmatprep.subr.mxu0 0.0
      %612 = vmatpush1.msra.mxu0 %v582
      %613 = vmatprep.subr.mxu0 0.0
      %614 = vmatpush1.msra.mxu0 %v583
      %615 = vmatprep.subr.mxu0 0.0
      %616 = vmatpush1.msra.mxu0 %v584
      %617 = vmatprep.subr.mxu0 0.0
      %618 = vmatpush1.msra.mxu0 %v585
      %619 = vmatprep.subr.mxu0 0.0
      %620 = vmatpush1.msra.mxu0 %v586
      %621 = vmatprep.subr.mxu0 0.0
      %622 = vmatpush1.msra.mxu0 %v587
      %623 = vmatprep.subr.mxu0 0.0
      %624 = vmatpush1.msra.mxu0 %v588
      %625 = vmatprep.subr.mxu0 0.0
      %626 = vmatpush1.msra.mxu0 %v589
      %627 = vmatprep.subr.mxu0 0.0
      %628 = vmatpush1.msra.mxu0 %v590
      %629 = vmatprep.subr.mxu0 0.0
      %630 = vmatpush1.msra.mxu0 %v591
      %631 = vmatprep.subr.mxu0 0.0
      %632 = vmatpush1.msra.mxu0 0.0
      %633 = vmatprep.subr.mxu0 0.0
      %634 = vmatpush1.msra.mxu0 0.0
      %635 = vmatprep.subr.mxu0 0.0
      %636 = vmatpush1.msra.mxu0 0.0
      %637 = vmatprep.subr.mxu0 0.0
      %638 = vmatpush1.msra.mxu0 0.0
      %639 = vmatprep.subr.mxu0 0.0
      %640 = vmatpush1.msra.mxu0 0.0
      %641 = vmatprep.subr.mxu0 0.0
      %642 = vmatpush1.msra.mxu0 0.0
      %643 = vmatprep.subr.mxu0 0.0
      %644 = vmatpush1.msra.mxu0 0.0
      %645 = vmatprep.subr.mxu0 0.0
      %646 = vmatpush1.msra.mxu0 0.0
      %647 = vmatprep.subr.mxu0 0.0
      %648 = vmatpush1.msra.mxu0 0.0
      %649 = vmatprep.subr.mxu0 0.0
      %650 = vmatpush1.msra.mxu0 0.0
      %651 = vmatprep.subr.mxu0 0.0
      %652 = vmatpush1.msra.mxu0 0.0
      %653 = vmatprep.subr.mxu0 0.0
      %654 = vmatpush1.msra.mxu0 0.0
      %655 = vmatprep.subr.mxu0 0.0
      %656 = vmatpush1.msra.mxu0 0.0
      %657 = vmatprep.subr.mxu0 0.0
      %658 = vmatpush1.msra.mxu0 0.0
      %659 = vmatprep.subr.mxu0 0.0
      %660 = vmatpush1.msra.mxu0 0.0
      %661 = vmatprep.subr.mxu0 0.0
      %662 = vmatpush1.msra.mxu0 0.0
      %663 = vmatprep.mubr.f32.mxu0 0.0
      %664 = vmatmul.mubr.f32.gmra.mrb[0].mxu0 %v560
      %v665 = vpop.f32.mrb[0].mxu0
      %v666 = vadd.f32 %v597, %v665
      %v667 = vpop.f32.mrb[0].mxu0
      %668 = vmatprep.mubr.f32.mxu0 0.0
      %669 = vmatmul.mubr.f32.gmra.mrb[0].mxu0 %v561
      %v670 = vpop.f32.mrb[0].mxu0
      %v671 = vadd.f32 %v597, %v670
      %v672 = vpop.f32.mrb[0].mxu0
      %673 = vmatprep.mubr.f32.mxu0 0.0
      %674 = vmatmul.mubr.f32.gmra.mrb[0].mxu0 %v562
      %v675 = vpop.f32.mrb[0].mxu0
      %v676 = vadd.f32 %v597, %v675
      %v677 = vpop.f32.mrb[0].mxu0
      %678 = vmatprep.mubr.f32.mxu0 0.0
      %679 = vmatmul.mubr.f32.gmra.mrb[0].mxu0 %v563
      %v680 = vpop.f32.mrb[0].mxu0
      %v681 = vadd.f32 %v597, %v680
      %v682 = vpop.f32.mrb[0].mxu0
      %683 = vmatprep.mubr.f32.mxu0 0.0
      %684 = vmatmul.mubr.f32.gmra.mrb[0].mxu0 %v564
      %v685 = vpop.f32.mrb[0].mxu0
      %v686 = vadd.f32 %v597, %v685
      %v687 = vpop.f32.mrb[0].mxu0
      %688 = vmatprep.mubr.f32.mxu0 0.0
      %689 = vmatmul.mubr.f32.gmra.mrb[0].mxu0 %v565
      %v690 = vpop.f32.mrb[0].mxu0
      %v691 = vadd.f32 %v597, %v690
      %v692 = vpop.f32.mrb[0].mxu0
      %693 = vmatprep.mubr.f32.mxu0 0.0
      %694 = vmatmul.mubr.f32.gmra.mrb[0].mxu0 %v566
      %v695 = vpop.f32.mrb[0].mxu0
      %v696 = vadd.f32 %v597, %v695
      %v697 = vpop.f32.mrb[0].mxu0
      %698 = vmatprep.mubr.f32.mxu0 0.0
      %699 = vmatmul.mubr.f32.gmra.mrb[0].mxu0 %v567
      %v700 = vpop.f32.mrb[0].mxu0
      %v701 = vadd.f32 %v597, %v700
      %v702 = vpop.f32.mrb[0].mxu0
      %703 = vmatprep.mubr.f32.mxu0 0.0
      %704 = vmatmul.mubr.f32.gmra.mrb[0].mxu0 %v568
      %v705 = vpop.f32.mrb[0].mxu0
      %v706 = vadd.f32 %v597, %v705
      %v707 = vpop.f32.mrb[0].mxu0
      %708 = vmatprep.mubr.f32.mxu0 0.0
      %709 = vmatmul.mubr.f32.gmra.mrb[0].mxu0 %v569
      %v710 = vpop.f32.mrb[0].mxu0
      %v711 = vadd.f32 %v597, %v710
      %v712 = vpop.f32.mrb[0].mxu0
      %713 = vmatprep.mubr.f32.mxu0 0.0
      %714 = vmatmul.mubr.f32.gmra.mrb[0].mxu0 %v570
      %v715 = vpop.f32.mrb[0].mxu0
      %v716 = vadd.f32 %v597, %v715
      %v717 = vpop.f32.mrb[0].mxu0
      %718 = vmatprep.mubr.f32.mxu0 0.0
      %719 = vmatmul.mubr.f32.gmra.mrb[0].mxu0 %v571
      %v720 = vpop.f32.mrb[0].mxu0
      %v721 = vadd.f32 %v597, %v720
      %v722 = vpop.f32.mrb[0].mxu0
      %723 = vmatprep.mubr.f32.mxu0 0.0
      %724 = vmatmul.mubr.f32.gmra.mrb[0].mxu0 %v572
      %v725 = vpop.f32.mrb[0].mxu0
      %v726 = vadd.f32 %v597, %v725
      %v727 = vpop.f32.mrb[0].mxu0
      %728 = vmatprep.mubr.f32.mxu0 0.0
      %729 = vmatmul.mubr.f32.gmra.mrb[0].mxu0 %v573
      %v730 = vpop.f32.mrb[0].mxu0
      %v731 = vadd.f32 %v597, %v730
      %v732 = vpop.f32.mrb[0].mxu0
      %733 = vmatprep.mubr.f32.mxu0 0.0
      %734 = vmatmul.mubr.f32.gmra.mrb[0].mxu0 %v574
      %v735 = vpop.f32.mrb[0].mxu0
      %v736 = vadd.f32 %v597, %v735
      %v737 = vpop.f32.mrb[0].mxu0
      %738 = vmatprep.mubr.f32.mxu0 0.0
      %739 = vmatmul.mubr.f32.gmra.mrb[0].mxu0 %v575
      %v740 = vpop.f32.mrb[0].mxu0
      %v741 = vadd.f32 %v597, %v740
      %v742 = vpop.f32.mrb[0].mxu0
      %743 = vdwg.mxu0
      %744 = vst [vmem:[#allocation11] sm:$0xff] %v666
      %745 = vst [vmem:[#allocation11 + $0x8] sm:$0xff] %v671
      %746 = vst [vmem:[#allocation11 + $0x10] sm:$0xff] %v676
      %747 = vst [vmem:[#allocation11 + $0x18] sm:$0xff] %v681
      %748 = vst [vmem:[#allocation11 + $0x20] sm:$0xff] %v686
      %749 = vst [vmem:[#allocation11 + $0x28] sm:$0xff] %v691
      %750 = vst [vmem:[#allocation11 + $0x30] sm:$0xff] %v696
      %751 = vst [vmem:[#allocation11 + $0x38] sm:$0xff] %v701
      %752 = vst [vmem:[#allocation11 + $0x40] sm:$0xff] %v706
      %753 = vst [vmem:[#allocation11 + $0x48] sm:$0xff] %v711
      %754 = vst [vmem:[#allocation11 + $0x50] sm:$0xff] %v716
      %755 = vst [vmem:[#allocation11 + $0x58] sm:$0xff] %v721
      %756 = vst [vmem:[#allocation11 + $0x60] sm:$0xff] %v726
      %757 = vst [vmem:[#allocation11 + $0x68] sm:$0xff] %v731
      %758 = vst [vmem:[#allocation11 + $0x70] sm:$0xff] %v736
      %759 = vst [vmem:[#allocation11 + $0x78] sm:$0xff] %v741
    $region49: #{tpu_custom_call.1} parent=1 // pred_fallthru
      _
    // Predicated region
    $region50: #{tpu_custom_call.1} parent=1 // pred_check
      _
    $region51: #{tpu_custom_call.1} parent=1 // pred_check_branch
      %761 = sbr.rel (0) target = $region53
    $region52: #{tpu_custom_call.1} parent=1 // pred_region
      %s763 = ssub.s32 2048, 2048
      %764 = vsyncadd [#allocation5], %s763
      %s765 = sshll.u32 [#allocation11], 4
      %s766 = int_to_ptr.vmem [resolvable:$true] %s765
      %771 = dma.vmem_to_hbm [thread:$0]  %s766, 2048, %s6, [#allocation5], 128, 128, 8
    $region53: #{tpu_custom_call.1} parent=1 // pred_fallthru
      _
    // Predicated region
    $region54: #{tpu_custom_call.1} parent=1 // pred_check
      _
    $region55: #{tpu_custom_call.1} parent=1 // pred_check_branch
      %773 = sbr.rel (0) target = $region57
    $region56: #{tpu_custom_call.1} parent=1 // pred_region
      %774 = dma.done [#allocation5], 2048
    $region57: #{tpu_custom_call.1} parent=1 // pred_fallthru
      _
    %775 = vsyncpa [#allocation4], 1
    %776 = vsyncpa [#allocation7], 1
    %777 = vsyncpa [#allocation10], 1
    %778 = vsyncpa [#allocation5], 1

</llo_original>
